<compile_context>
chip_gen: v5e
topology: v5e:2x2
jax: 0.10.0
libtpu: 0.0.40
codegen_flags: <defaults>
</compile_context>

<pallas_src>
import jax
import jax.numpy as jnp
from jax.experimental import pallas as pl
from jax.experimental.pallas import tpu as pltpu


def _encoder_kernel(x_ref, wlin_ref, blin_ref, wih_ref, whh_ref, bias_ref,
                    out_ref):
    """Fused bidirectional LSTMCell encoder (single TensorCore, no grid).

    x_ref   : (T*B, 2*Din)  lane-stacked rows [ left_x[t,b] | right_x[T-1-t,b] ]
    wlin_ref: (2*Din, 2*hid) block-diagonal shared Linear (pre-transposed)
    blin_ref: (1, 2*hid)     [ b_lin | b_lin ]
    wih_ref : (2*hid, 8H)    vstacked "spread" input-side weights of both dirs
    whh_ref : (2H, 8H)       block-diagonal recurrent weight, gate-major columns
                             [ i_l i_r | f_l f_r | o_l o_r | g_l g_r ]
    bias_ref: (1, 8H)        combined (b_ih + b_hh) of both directions
    out_ref : (B, T*2H)      lanes [t*2H : t*2H+H]      = left  h(t)
                             lanes [t*2H+H : (t+1)*2H]  = right h(t)
    """
    H2, G = whh_ref.shape          # H2 = 2*H, G = 8*H
    H = H2 // 2
    B = out_ref.shape[0]
    T = out_ref.shape[1] // H2

    # ---- Phase 1: batched input-side matmuls (hoisted off the serial path) ----
    proj = jnp.tanh(
        jnp.dot(x_ref[...], wlin_ref[...], preferred_element_type=jnp.float32)
        + blin_ref[...])                                      # (T*B, 2*hid)
    gx = (jnp.dot(proj, wih_ref[...], preferred_element_type=jnp.float32)
          + bias_ref[...])                                    # (T*B, 8H), in vregs

    # ---- Phase 2: fused two-direction recurrence (statically unrolled) -------
    whh = whh_ref[...]                                        # (2H, 8H)
    h = jnp.zeros((B, H2), jnp.float32)                       # [h_left | h_right]
    c = jnp.zeros((B, H2), jnp.float32)
    left_h = [None] * T
    right_h = [None] * T
    for s in range(T):
        gates = gx[s * B:(s + 1) * B] + jnp.dot(
            h, whh, preferred_element_type=jnp.float32)       # (B, 8H)
        sig = jax.nn.sigmoid(gates[:, 0:3 * H2])              # contiguous [i|f|o]
        i = sig[:, 0 * H2:1 * H2]
        f = sig[:, 1 * H2:2 * H2]
        o = sig[:, 2 * H2:3 * H2]
        g = jnp.tanh(gates[:, 3 * H2:4 * H2])
        c = f * c + i * g
        h = o * jnp.tanh(c)
        left_h[s] = h[:, 0:H]                 # left h belongs to original time s
        right_h[T - 1 - s] = h[:, H:H2]       # right h belongs to time T-1-s

    # ---- Single lane-dense writeout (no per-step masked stores) --------------
    out = jnp.concatenate(
        [jnp.concatenate([left_h[t], right_h[t]], axis=1) for t in range(T)],
        axis=1)                                               # (B, T*2H)
    out_ref[...] = out


def _build_fused_params(p):
    """Re-layout PyTorch-style Encoder weights for the fused Pallas kernel.

    Fused 8H gate-axis column layout (gate-major, direction-interleaved):
        [ i_l i_r | f_l f_r | o_l o_r | g_l g_r ]   (each chunk H lanes)
    so sigmoid runs on one contiguous 3*2H slice, tanh on the trailing 2H,
    and every gate is a contiguous 2H slice aligned with the [left|right]
    layout of the carried h / c state.  PyTorch gate row order is (i, f, g, o).
    """
    w_lin = p["w_lin"]                           # (hid, Din) torch Linear layout
    hid, Din = w_lin.shape
    H = p["w_hh_l"].shape[1]
    fused_gate_src = (0, 1, 3, 2)                # fused blocks i,f,o,g <- torch i,f,g,o

    def spread_ih(w_ih, half):                   # w_ih: (4H, hid)
        wt = w_ih.T                              # (hid, 4H)
        w = jnp.zeros((hid, 8 * H), jnp.float32)
        for k, src in enumerate(fused_gate_src):
            col = 2 * k * H + half * H
            w = w.at[:, col:col + H].set(wt[:, src * H:(src + 1) * H])
        return w

    def block_hh(w_hh, half):                    # w_hh: (4H, H)
        wt = w_hh.T                              # (H, 4H)
        w = jnp.zeros((2 * H, 8 * H), jnp.float32)
        for k, src in enumerate(fused_gate_src):
            col = 2 * k * H + half * H
            w = w.at[half * H:(half + 1) * H, col:col + H].set(
                wt[:, src * H:(src + 1) * H])
        return w

    def spread_bias(b, half):                    # b: (4H,)
        v = jnp.zeros((8 * H,), jnp.float32)
        for k, src in enumerate(fused_gate_src):
            col = 2 * k * H + half * H
            v = v.at[col:col + H].set(b[src * H:(src + 1) * H])
        return v

    # Block-diagonal shared Linear: acts on lane-stacked [left | right] rows.
    wlin_t = w_lin.T                             # (Din, hid)
    wlin_bd = jnp.zeros((2 * Din, 2 * hid), jnp.float32)
    wlin_bd = wlin_bd.at[:Din, :hid].set(wlin_t)
    wlin_bd = wlin_bd.at[Din:, hid:].set(wlin_t)
    blin2 = jnp.concatenate([p["b_lin"], p["b_lin"]])[None, :]        # (1, 2*hid)

    # Stacked input-side weight: rows [0:hid] consume the left projection
    # lanes, rows [hid:2hid] the right projection lanes.
    wih = jnp.concatenate([spread_ih(p["w_ih_l"], 0),
                           spread_ih(p["w_ih_r"], 1)], axis=0)        # (2*hid, 8H)
    whh = block_hh(p["w_hh_l"], 0) + block_hh(p["w_hh_r"], 1)         # (2H, 8H)
    bias = (spread_bias(p["b_ih_l"] + p["b_hh_l"], 0)
            + spread_bias(p["b_ih_r"] + p["b_hh_r"], 1))[None, :]     # (1, 8H)
    return wlin_bd, blin2, wih, whh, bias, H


def encoder_forward(left_x, right_x, params):
    """left_x, right_x: (T, B, D_in) time-major concatenated embeddings.
    params: PyTorch-layout weights. Returns (B, T, 2*H) like the module."""
    T, B, Din = left_x.shape
    wlin_bd, blin2, wih, whh, bias, H = _build_fused_params(params)

    # Lane-stack the two streams: left in natural time order, right pre-reversed
    # so kernel step s consumes right time T-1-s (the module's backward LSTM).
    x_all = jnp.concatenate(
        [left_x.reshape(T * B, Din),
         right_x[::-1].reshape(T * B, Din)], axis=1)          # (T*B, 2*Din)

    vmem = pl.BlockSpec(memory_space=pltpu.MemorySpace.VMEM)
    out = pl.pallas_call(
        _encoder_kernel,
        out_shape=jax.ShapeDtypeStruct((B, T * 2 * H), jnp.float32),
        in_specs=[vmem] * 6,
        out_specs=vmem,
    )(x_all, wlin_bd, blin2, wih, whh, bias)

    # Free contiguous reshape (no transpose): lanes are [t-major | left,right].
    return out.reshape(B, T, 2 * H)


def reference_forward(left_x, right_x, p):
    """Pure-JAX reference (PyTorch layout / math) for the correctness check."""
    T, B, _ = left_x.shape
    H = p["w_hh_l"].shape[1]

    def proj(x):
        return jnp.tanh(x @ p["w_lin"].T + p["b_lin"])

    def cell(x, h, c, wih, whh, bih, bhh):
        g = x @ wih.T + bih + h @ whh.T + bhh
        i, f, gg, o = jnp.split(g, 4, axis=-1)
        c = jax.nn.sigmoid(f) * c + jax.nn.sigmoid(i) * jnp.tanh(gg)
        h = jax.nn.sigmoid(o) * jnp.tanh(c)
        return h, c

    h = jnp.zeros((B, H), jnp.float32)
    c = jnp.zeros((B, H), jnp.float32)
    left_out = []
    for t in range(T):
        h, c = cell(proj(left_x[t]), h, c,
                    p["w_ih_l"], p["w_hh_l"], p["b_ih_l"], p["b_hh_l"])
        left_out.append(h)

    h = jnp.zeros((B, H), jnp.float32)
    c = jnp.zeros((B, H), jnp.float32)
    right_out = [None] * T
    for t in reversed(range(T)):
        h, c = cell(proj(right_x[t]), h, c,
                    p["w_ih_r"], p["w_hh_r"], p["b_ih_r"], p["b_hh_r"])
        right_out[t] = h

    left = jnp.stack(left_out, axis=1)        # (B, T, H)
    right = jnp.stack(right_out, axis=1)      # (B, T, H)
    return jnp.concatenate([left, right], axis=2)


if __name__ == "__main__":
    # Small synthetic config consistent with the module's __init__.
    B, T = 2, 8                       # batch_length, char_features_num
    embed_char_dim = 16
    embed_bichar_dim = 16
    embed_char_num = 20
    embed_bichar_num = 24
    static_char_num = 20
    static_bichar_num = 24
    hidden_size = 32                  # args.hidden_size
    rnn_hidden = 32                   # args.rnn_hidden_dim
    input_dim = (embed_char_dim + embed_bichar_dim) * 2   # 64
    PAD = 0                           # char/bichar PaddingID

    key = jax.random.PRNGKey(0)
    ks = list(jax.random.split(key, 24))

    def nrm(k, shape, scale=0.1):
        return scale * jax.random.normal(k, shape, jnp.float32)

    # Embedding tables (padding row zeroed, mirroring __init__).
    char_embed = nrm(ks[0], (embed_char_num, embed_char_dim)).at[PAD].set(0.0)
    bichar_embed = nrm(ks[1], (embed_bichar_num, embed_bichar_dim)).at[PAD].set(0.0)
    lim_c = (3.0 / embed_char_dim) ** 0.5
    lim_b = (3.0 / embed_bichar_dim) ** 0.5
    static_char_embed = jax.random.uniform(
        ks[2], (static_char_num, embed_char_dim), jnp.float32, -lim_c, lim_c
    ).at[PAD].set(0.0)
    static_bichar_embed = jax.random.uniform(
        ks[3], (static_bichar_num, embed_bichar_dim), jnp.float32, -lim_b, lim_b
    ).at[PAD].set(0.0)

    # Linear (xavier uniform) + bias (PyTorch layout: (out, in)).
    lim_lin = (6.0 / (input_dim + hidden_size)) ** 0.5
    w_lin_pt = jax.random.uniform(ks[4], (hidden_size, input_dim),
                                  jnp.float32, -lim_lin, lim_lin)
    lim_blin = (6.0 / (hidden_size + 1)) ** 0.5
    b_lin = jax.random.uniform(ks[5], (hidden_size,), jnp.float32,
                               -lim_blin, lim_blin)

    def lstm_params(k1, k2, k3, k4):
        lim_ih = (6.0 / (4 * rnn_hidden + hidden_size)) ** 0.5
        lim_hh = (6.0 / (4 * rnn_hidden + rnn_hidden)) ** 0.5
        w_ih = jax.random.uniform(k1, (4 * rnn_hidden, hidden_size),
                                  jnp.float32, -lim_ih, lim_ih)
        w_hh = jax.random.uniform(k2, (4 * rnn_hidden, rnn_hidden),
                                  jnp.float32, -lim_hh, lim_hh)
        v = (6.0 / (rnn_hidden + 1)) ** 0.5
        b_ih = jax.random.uniform(k3, (4 * rnn_hidden,), jnp.float32, -v, v)
        b_hh = jax.random.uniform(k4, (4 * rnn_hidden,), jnp.float32, -v, v)
        return w_ih, w_hh, b_ih, b_hh

    w_ih_l, w_hh_l, b_ih_l, b_hh_l = lstm_params(ks[6], ks[7], ks[8], ks[9])
    w_ih_r, w_hh_r, b_ih_r, b_hh_r = lstm_params(ks[10], ks[11], ks[12], ks[13])

    # Feature index tensors (the `features.*` inputs), shape (B, T), int32.
    char_idx = jax.random.randint(ks[14], (B, T), 0, embed_char_num)
    bichar_l_idx = jax.random.randint(ks[15], (B, T), 0, embed_bichar_num)
    bichar_r_idx = jax.random.randint(ks[16], (B, T), 0, embed_bichar_num)
    s_char_idx = jax.random.randint(ks[17], (B, T), 0, static_char_num)
    s_bichar_l_idx = jax.random.randint(ks[18], (B, T), 0, static_bichar_num)
    s_bichar_r_idx = jax.random.randint(ks[19], (B, T), 0, static_bichar_num)

    # Glue: embedding lookups + concatenation (dropout_embed = identity / eval).
    ce = jnp.take(char_embed, char_idx, axis=0)
    sce = jnp.take(static_char_embed, s_char_idx, axis=0)
    ble = jnp.take(bichar_embed, bichar_l_idx, axis=0)
    bre = jnp.take(bichar_embed, bichar_r_idx, axis=0)
    sble = jnp.take(static_bichar_embed, s_bichar_l_idx, axis=0)
    sbre = jnp.take(static_bichar_embed, s_bichar_r_idx, axis=0)

    left_concat = jnp.concatenate([ce, sce, ble, sble], axis=2)    # (B, T, 64)
    right_concat = jnp.concatenate([ce, sce, bre, sbre], axis=2)   # (B, T, 64)

    # Time-major for the kernel (matches permute(1, 0, 2) in the module).
    left_x = jnp.transpose(left_concat, (1, 0, 2))
    right_x = jnp.transpose(right_concat, (1, 0, 2))

    params = dict(
        w_lin=w_lin_pt, b_lin=b_lin,
        w_ih_l=w_ih_l, w_hh_l=w_hh_l, b_ih_l=b_ih_l, b_hh_l=b_hh_l,
        w_ih_r=w_ih_r, w_hh_r=w_hh_r, b_ih_r=b_ih_r, b_hh_r=b_hh_r,
    )

    encoder_output = encoder_forward(left_x, right_x, params)
    encoder_output = jax.block_until_ready(encoder_output)

    assert encoder_output.shape == (B, T, 2 * rnn_hidden)
    ref = reference_forward(left_x, right_x, params)
    max_err = float(jnp.max(jnp.abs(encoder_output - ref)))
    assert max_err < 1e-4, f"mismatch vs reference: {max_err}"
    print("KERNEL_OK")
</pallas_src>

<mosaic_0001>
module attributes {stable_mosaic.version = 11 : i64} {
  func.func @_encoder_kernel(%arg0: memref<16x128xf32, #tpu.memory_space<vmem>>, %arg1: memref<128x64xf32, #tpu.memory_space<vmem>>, %arg2: memref<1x64xf32, #tpu.memory_space<vmem>>, %arg3: memref<64x256xf32, #tpu.memory_space<vmem>>, %arg4: memref<64x256xf32, #tpu.memory_space<vmem>>, %arg5: memref<1x256xf32, #tpu.memory_space<vmem>>, %arg6: memref<2x512xf32, #tpu.memory_space<vmem>>) attributes {dimension_semantics = [], scalar_prefetch = 0 : i64, scratch_operands = 0 : i64, tpu.core_type = #tpu.core_type<tc>} {
    %c0 = arith.constant 0 : index
    %c0_0 = arith.constant 0 : index
    %0 = vector.load %arg0[%c0, %c0_0] : memref<16x128xf32, #tpu.memory_space<vmem>>, vector<16x128xf32>
    %c0_1 = arith.constant 0 : index
    %c0_2 = arith.constant 0 : index
    %1 = vector.load %arg1[%c0_1, %c0_2] : memref<128x64xf32, #tpu.memory_space<vmem>>, vector<128x64xf32>
    %cst = arith.constant dense<0.000000e+00> : vector<16x64xf32>
    %2 = tpu.matmul %0, %1, %cst {dimension_numbers = #tpu.dot_dimension_numbers<[1], [0], [0], [1], [0, 0, 1, 1], [], []>} : vector<16x128xf32>, vector<128x64xf32>, vector<16x64xf32> -> vector<16x64xf32>
    %c0_3 = arith.constant 0 : index
    %c0_4 = arith.constant 0 : index
    %3 = vector.load %arg2[%c0_3, %c0_4] : memref<1x64xf32, #tpu.memory_space<vmem>>, vector<1x64xf32>
    %4 = vector.broadcast %3 : vector<1x64xf32> to vector<16x64xf32>
    %5 = arith.addf %2, %4 : vector<16x64xf32>
    %6 = math.tanh %5 : vector<16x64xf32>
    %c0_5 = arith.constant 0 : index
    %c0_6 = arith.constant 0 : index
    %7 = vector.load %arg3[%c0_5, %c0_6] : memref<64x256xf32, #tpu.memory_space<vmem>>, vector<64x256xf32>
    %cst_7 = arith.constant dense<0.000000e+00> : vector<16x256xf32>
    %8 = tpu.matmul %6, %7, %cst_7 {dimension_numbers = #tpu.dot_dimension_numbers<[1], [0], [0], [1], [0, 0, 1, 1], [], []>} : vector<16x64xf32>, vector<64x256xf32>, vector<16x256xf32> -> vector<16x256xf32>
    %c0_8 = arith.constant 0 : index
    %c0_9 = arith.constant 0 : index
    %9 = vector.load %arg5[%c0_8, %c0_9] : memref<1x256xf32, #tpu.memory_space<vmem>>, vector<1x256xf32>
    %10 = vector.broadcast %9 : vector<1x256xf32> to vector<16x256xf32>
    %11 = arith.addf %8, %10 : vector<16x256xf32>
    %c0_10 = arith.constant 0 : index
    %c0_11 = arith.constant 0 : index
    %12 = vector.load %arg4[%c0_10, %c0_11] : memref<64x256xf32, #tpu.memory_space<vmem>>, vector<64x256xf32>
    %cst_12 = arith.constant 0.000000e+00 : f32
    %13 = vector.broadcast %cst_12 : f32 to vector<2x64xf32>
    %cst_13 = arith.constant 0.000000e+00 : f32
    %14 = vector.broadcast %cst_13 : f32 to vector<2x64xf32>
    %15 = vector.extract_strided_slice %11 {offsets = [0, 0], sizes = [2, 256], strides = [1, 1]} : vector<16x256xf32> to vector<2x256xf32>
    %cst_14 = arith.constant dense<0.000000e+00> : vector<2x256xf32>
    %16 = tpu.matmul %13, %12, %cst_14 {dimension_numbers = #tpu.dot_dimension_numbers<[1], [0], [0], [1], [0, 0, 1, 1], [], []>} : vector<2x64xf32>, vector<64x256xf32>, vector<2x256xf32> -> vector<2x256xf32>
    %17 = arith.addf %15, %16 : vector<2x256xf32>
    %18 = vector.extract_strided_slice %17 {offsets = [0, 0], sizes = [2, 192], strides = [1, 1]} : vector<2x256xf32> to vector<2x192xf32>
    %19 = arith.negf %18 : vector<2x192xf32>
    %20 = math.exp %19 : vector<2x192xf32>
    %cst_15 = arith.constant 1.000000e+00 : f32
    %21 = vector.broadcast %cst_15 : f32 to vector<2x192xf32>
    %22 = arith.addf %21, %20 : vector<2x192xf32>
    %23 = arith.divf %21, %22 : vector<2x192xf32>
    %24 = vector.extract_strided_slice %23 {offsets = [0, 0], sizes = [2, 64], strides = [1, 1]} : vector<2x192xf32> to vector<2x64xf32>
    %25 = vector.extract_strided_slice %23 {offsets = [0, 64], sizes = [2, 64], strides = [1, 1]} : vector<2x192xf32> to vector<2x64xf32>
    %26 = vector.extract_strided_slice %23 {offsets = [0, 128], sizes = [2, 64], strides = [1, 1]} : vector<2x192xf32> to vector<2x64xf32>
    %27 = vector.extract_strided_slice %17 {offsets = [0, 192], sizes = [2, 64], strides = [1, 1]} : vector<2x256xf32> to vector<2x64xf32>
    %28 = math.tanh %27 : vector<2x64xf32>
    %29 = arith.mulf %25, %14 : vector<2x64xf32>
    %30 = arith.mulf %24, %28 : vector<2x64xf32>
    %31 = arith.addf %29, %30 : vector<2x64xf32>
    %32 = math.tanh %31 : vector<2x64xf32>
    %33 = arith.mulf %26, %32 : vector<2x64xf32>
    %34 = vector.extract_strided_slice %33 {offsets = [0, 0], sizes = [2, 32], strides = [1, 1]} : vector<2x64xf32> to vector<2x32xf32>
    %35 = vector.extract_strided_slice %33 {offsets = [0, 32], sizes = [2, 32], strides = [1, 1]} : vector<2x64xf32> to vector<2x32xf32>
    %36 = vector.extract_strided_slice %11 {offsets = [2, 0], sizes = [2, 256], strides = [1, 1]} : vector<16x256xf32> to vector<2x256xf32>
    %cst_16 = arith.constant dense<0.000000e+00> : vector<2x256xf32>
    %37 = tpu.matmul %33, %12, %cst_16 {dimension_numbers = #tpu.dot_dimension_numbers<[1], [0], [0], [1], [0, 0, 1, 1], [], []>} : vector<2x64xf32>, vector<64x256xf32>, vector<2x256xf32> -> vector<2x256xf32>
    %38 = arith.addf %36, %37 : vector<2x256xf32>
    %39 = vector.extract_strided_slice %38 {offsets = [0, 0], sizes = [2, 192], strides = [1, 1]} : vector<2x256xf32> to vector<2x192xf32>
    %40 = arith.negf %39 : vector<2x192xf32>
    %41 = math.exp %40 : vector<2x192xf32>
    %cst_17 = arith.constant 1.000000e+00 : f32
    %42 = vector.broadcast %cst_17 : f32 to vector<2x192xf32>
    %43 = arith.addf %42, %41 : vector<2x192xf32>
    %44 = arith.divf %42, %43 : vector<2x192xf32>
    %45 = vector.extract_strided_slice %44 {offsets = [0, 0], sizes = [2, 64], strides = [1, 1]} : vector<2x192xf32> to vector<2x64xf32>
    %46 = vector.extract_strided_slice %44 {offsets = [0, 64], sizes = [2, 64], strides = [1, 1]} : vector<2x192xf32> to vector<2x64xf32>
    %47 = vector.extract_strided_slice %44 {offsets = [0, 128], sizes = [2, 64], strides = [1, 1]} : vector<2x192xf32> to vector<2x64xf32>
    %48 = vector.extract_strided_slice %38 {offsets = [0, 192], sizes = [2, 64], strides = [1, 1]} : vector<2x256xf32> to vector<2x64xf32>
    %49 = math.tanh %48 : vector<2x64xf32>
    %50 = arith.mulf %46, %31 : vector<2x64xf32>
    %51 = arith.mulf %45, %49 : vector<2x64xf32>
    %52 = arith.addf %50, %51 : vector<2x64xf32>
    %53 = math.tanh %52 : vector<2x64xf32>
    %54 = arith.mulf %47, %53 : vector<2x64xf32>
    %55 = vector.extract_strided_slice %54 {offsets = [0, 0], sizes = [2, 32], strides = [1, 1]} : vector<2x64xf32> to vector<2x32xf32>
    %56 = vector.extract_strided_slice %54 {offsets = [0, 32], sizes = [2, 32], strides = [1, 1]} : vector<2x64xf32> to vector<2x32xf32>
    %57 = vector.extract_strided_slice %11 {offsets = [4, 0], sizes = [2, 256], strides = [1, 1]} : vector<16x256xf32> to vector<2x256xf32>
    %cst_18 = arith.constant dense<0.000000e+00> : vector<2x256xf32>
    %58 = tpu.matmul %54, %12, %cst_18 {dimension_numbers = #tpu.dot_dimension_numbers<[1], [0], [0], [1], [0, 0, 1, 1], [], []>} : vector<2x64xf32>, vector<64x256xf32>, vector<2x256xf32> -> vector<2x256xf32>
    %59 = arith.addf %57, %58 : vector<2x256xf32>
    %60 = vector.extract_strided_slice %59 {offsets = [0, 0], sizes = [2, 192], strides = [1, 1]} : vector<2x256xf32> to vector<2x192xf32>
    %61 = arith.negf %60 : vector<2x192xf32>
    %62 = math.exp %61 : vector<2x192xf32>
    %cst_19 = arith.constant 1.000000e+00 : f32
    %63 = vector.broadcast %cst_19 : f32 to vector<2x192xf32>
    %64 = arith.addf %63, %62 : vector<2x192xf32>
    %65 = arith.divf %63, %64 : vector<2x192xf32>
    %66 = vector.extract_strided_slice %65 {offsets = [0, 0], sizes = [2, 64], strides = [1, 1]} : vector<2x192xf32> to vector<2x64xf32>
    %67 = vector.extract_strided_slice %65 {offsets = [0, 64], sizes = [2, 64], strides = [1, 1]} : vector<2x192xf32> to vector<2x64xf32>
    %68 = vector.extract_strided_slice %65 {offsets = [0, 128], sizes = [2, 64], strides = [1, 1]} : vector<2x192xf32> to vector<2x64xf32>
    %69 = vector.extract_strided_slice %59 {offsets = [0, 192], sizes = [2, 64], strides = [1, 1]} : vector<2x256xf32> to vector<2x64xf32>
    %70 = math.tanh %69 : vector<2x64xf32>
    %71 = arith.mulf %67, %52 : vector<2x64xf32>
    %72 = arith.mulf %66, %70 : vector<2x64xf32>
    %73 = arith.addf %71, %72 : vector<2x64xf32>
    %74 = math.tanh %73 : vector<2x64xf32>
    %75 = arith.mulf %68, %74 : vector<2x64xf32>
    %76 = vector.extract_strided_slice %75 {offsets = [0, 0], sizes = [2, 32], strides = [1, 1]} : vector<2x64xf32> to vector<2x32xf32>
    %77 = vector.extract_strided_slice %75 {offsets = [0, 32], sizes = [2, 32], strides = [1, 1]} : vector<2x64xf32> to vector<2x32xf32>
    %78 = vector.extract_strided_slice %11 {offsets = [6, 0], sizes = [2, 256], strides = [1, 1]} : vector<16x256xf32> to vector<2x256xf32>
    %cst_20 = arith.constant dense<0.000000e+00> : vector<2x256xf32>
    %79 = tpu.matmul %75, %12, %cst_20 {dimension_numbers = #tpu.dot_dimension_numbers<[1], [0], [0], [1], [0, 0, 1, 1], [], []>} : vector<2x64xf32>, vector<64x256xf32>, vector<2x256xf32> -> vector<2x256xf32>
    %80 = arith.addf %78, %79 : vector<2x256xf32>
    %81 = vector.extract_strided_slice %80 {offsets = [0, 0], sizes = [2, 192], strides = [1, 1]} : vector<2x256xf32> to vector<2x192xf32>
    %82 = arith.negf %81 : vector<2x192xf32>
    %83 = math.exp %82 : vector<2x192xf32>
    %cst_21 = arith.constant 1.000000e+00 : f32
    %84 = vector.broadcast %cst_21 : f32 to vector<2x192xf32>
    %85 = arith.addf %84, %83 : vector<2x192xf32>
    %86 = arith.divf %84, %85 : vector<2x192xf32>
    %87 = vector.extract_strided_slice %86 {offsets = [0, 0], sizes = [2, 64], strides = [1, 1]} : vector<2x192xf32> to vector<2x64xf32>
    %88 = vector.extract_strided_slice %86 {offsets = [0, 64], sizes = [2, 64], strides = [1, 1]} : vector<2x192xf32> to vector<2x64xf32>
    %89 = vector.extract_strided_slice %86 {offsets = [0, 128], sizes = [2, 64], strides = [1, 1]} : vector<2x192xf32> to vector<2x64xf32>
    %90 = vector.extract_strided_slice %80 {offsets = [0, 192], sizes = [2, 64], strides = [1, 1]} : vector<2x256xf32> to vector<2x64xf32>
    %91 = math.tanh %90 : vector<2x64xf32>
    %92 = arith.mulf %88, %73 : vector<2x64xf32>
    %93 = arith.mulf %87, %91 : vector<2x64xf32>
    %94 = arith.addf %92, %93 : vector<2x64xf32>
    %95 = math.tanh %94 : vector<2x64xf32>
    %96 = arith.mulf %89, %95 : vector<2x64xf32>
    %97 = vector.extract_strided_slice %96 {offsets = [0, 0], sizes = [2, 32], strides = [1, 1]} : vector<2x64xf32> to vector<2x32xf32>
    %98 = vector.extract_strided_slice %96 {offsets = [0, 32], sizes = [2, 32], strides = [1, 1]} : vector<2x64xf32> to vector<2x32xf32>
    %99 = vector.extract_strided_slice %11 {offsets = [8, 0], sizes = [2, 256], strides = [1, 1]} : vector<16x256xf32> to vector<2x256xf32>
    %cst_22 = arith.constant dense<0.000000e+00> : vector<2x256xf32>
    %100 = tpu.matmul %96, %12, %cst_22 {dimension_numbers = #tpu.dot_dimension_numbers<[1], [0], [0], [1], [0, 0, 1, 1], [], []>} : vector<2x64xf32>, vector<64x256xf32>, vector<2x256xf32> -> vector<2x256xf32>
    %101 = arith.addf %99, %100 : vector<2x256xf32>
    %102 = vector.extract_strided_slice %101 {offsets = [0, 0], sizes = [2, 192], strides = [1, 1]} : vector<2x256xf32> to vector<2x192xf32>
    %103 = arith.negf %102 : vector<2x192xf32>
    %104 = math.exp %103 : vector<2x192xf32>
    %cst_23 = arith.constant 1.000000e+00 : f32
    %105 = vector.broadcast %cst_23 : f32 to vector<2x192xf32>
    %106 = arith.addf %105, %104 : vector<2x192xf32>
    %107 = arith.divf %105, %106 : vector<2x192xf32>
    %108 = vector.extract_strided_slice %107 {offsets = [0, 0], sizes = [2, 64], strides = [1, 1]} : vector<2x192xf32> to vector<2x64xf32>
    %109 = vector.extract_strided_slice %107 {offsets = [0, 64], sizes = [2, 64], strides = [1, 1]} : vector<2x192xf32> to vector<2x64xf32>
    %110 = vector.extract_strided_slice %107 {offsets = [0, 128], sizes = [2, 64], strides = [1, 1]} : vector<2x192xf32> to vector<2x64xf32>
    %111 = vector.extract_strided_slice %101 {offsets = [0, 192], sizes = [2, 64], strides = [1, 1]} : vector<2x256xf32> to vector<2x64xf32>
    %112 = math.tanh %111 : vector<2x64xf32>
    %113 = arith.mulf %109, %94 : vector<2x64xf32>
    %114 = arith.mulf %108, %112 : vector<2x64xf32>
    %115 = arith.addf %113, %114 : vector<2x64xf32>
    %116 = math.tanh %115 : vector<2x64xf32>
    %117 = arith.mulf %110, %116 : vector<2x64xf32>
    %118 = vector.extract_strided_slice %117 {offsets = [0, 0], sizes = [2, 32], strides = [1, 1]} : vector<2x64xf32> to vector<2x32xf32>
    %119 = vector.extract_strided_slice %117 {offsets = [0, 32], sizes = [2, 32], strides = [1, 1]} : vector<2x64xf32> to vector<2x32xf32>
    %120 = vector.extract_strided_slice %11 {offsets = [10, 0], sizes = [2, 256], strides = [1, 1]} : vector<16x256xf32> to vector<2x256xf32>
    %cst_24 = arith.constant dense<0.000000e+00> : vector<2x256xf32>
    %121 = tpu.matmul %117, %12, %cst_24 {dimension_numbers = #tpu.dot_dimension_numbers<[1], [0], [0], [1], [0, 0, 1, 1], [], []>} : vector<2x64xf32>, vector<64x256xf32>, vector<2x256xf32> -> vector<2x256xf32>
    %122 = arith.addf %120, %121 : vector<2x256xf32>
    %123 = vector.extract_strided_slice %122 {offsets = [0, 0], sizes = [2, 192], strides = [1, 1]} : vector<2x256xf32> to vector<2x192xf32>
    %124 = arith.negf %123 : vector<2x192xf32>
    %125 = math.exp %124 : vector<2x192xf32>
    %cst_25 = arith.constant 1.000000e+00 : f32
    %126 = vector.broadcast %cst_25 : f32 to vector<2x192xf32>
    %127 = arith.addf %126, %125 : vector<2x192xf32>
    %128 = arith.divf %126, %127 : vector<2x192xf32>
    %129 = vector.extract_strided_slice %128 {offsets = [0, 0], sizes = [2, 64], strides = [1, 1]} : vector<2x192xf32> to vector<2x64xf32>
    %130 = vector.extract_strided_slice %128 {offsets = [0, 64], sizes = [2, 64], strides = [1, 1]} : vector<2x192xf32> to vector<2x64xf32>
    %131 = vector.extract_strided_slice %128 {offsets = [0, 128], sizes = [2, 64], strides = [1, 1]} : vector<2x192xf32> to vector<2x64xf32>
    %132 = vector.extract_strided_slice %122 {offsets = [0, 192], sizes = [2, 64], strides = [1, 1]} : vector<2x256xf32> to vector<2x64xf32>
    %133 = math.tanh %132 : vector<2x64xf32>
    %134 = arith.mulf %130, %115 : vector<2x64xf32>
    %135 = arith.mulf %129, %133 : vector<2x64xf32>
    %136 = arith.addf %134, %135 : vector<2x64xf32>
    %137 = math.tanh %136 : vector<2x64xf32>
    %138 = arith.mulf %131, %137 : vector<2x64xf32>
    %139 = vector.extract_strided_slice %138 {offsets = [0, 0], sizes = [2, 32], strides = [1, 1]} : vector<2x64xf32> to vector<2x32xf32>
    %140 = vector.extract_strided_slice %138 {offsets = [0, 32], sizes = [2, 32], strides = [1, 1]} : vector<2x64xf32> to vector<2x32xf32>
    %141 = vector.extract_strided_slice %11 {offsets = [12, 0], sizes = [2, 256], strides = [1, 1]} : vector<16x256xf32> to vector<2x256xf32>
    %cst_26 = arith.constant dense<0.000000e+00> : vector<2x256xf32>
    %142 = tpu.matmul %138, %12, %cst_26 {dimension_numbers = #tpu.dot_dimension_numbers<[1], [0], [0], [1], [0, 0, 1, 1], [], []>} : vector<2x64xf32>, vector<64x256xf32>, vector<2x256xf32> -> vector<2x256xf32>
    %143 = arith.addf %141, %142 : vector<2x256xf32>
    %144 = vector.extract_strided_slice %143 {offsets = [0, 0], sizes = [2, 192], strides = [1, 1]} : vector<2x256xf32> to vector<2x192xf32>
    %145 = arith.negf %144 : vector<2x192xf32>
    %146 = math.exp %145 : vector<2x192xf32>
    %cst_27 = arith.constant 1.000000e+00 : f32
    %147 = vector.broadcast %cst_27 : f32 to vector<2x192xf32>
    %148 = arith.addf %147, %146 : vector<2x192xf32>
    %149 = arith.divf %147, %148 : vector<2x192xf32>
    %150 = vector.extract_strided_slice %149 {offsets = [0, 0], sizes = [2, 64], strides = [1, 1]} : vector<2x192xf32> to vector<2x64xf32>
    %151 = vector.extract_strided_slice %149 {offsets = [0, 64], sizes = [2, 64], strides = [1, 1]} : vector<2x192xf32> to vector<2x64xf32>
    %152 = vector.extract_strided_slice %149 {offsets = [0, 128], sizes = [2, 64], strides = [1, 1]} : vector<2x192xf32> to vector<2x64xf32>
    %153 = vector.extract_strided_slice %143 {offsets = [0, 192], sizes = [2, 64], strides = [1, 1]} : vector<2x256xf32> to vector<2x64xf32>
    %154 = math.tanh %153 : vector<2x64xf32>
    %155 = arith.mulf %151, %136 : vector<2x64xf32>
    %156 = arith.mulf %150, %154 : vector<2x64xf32>
    %157 = arith.addf %155, %156 : vector<2x64xf32>
    %158 = math.tanh %157 : vector<2x64xf32>
    %159 = arith.mulf %152, %158 : vector<2x64xf32>
    %160 = vector.extract_strided_slice %159 {offsets = [0, 0], sizes = [2, 32], strides = [1, 1]} : vector<2x64xf32> to vector<2x32xf32>
    %161 = vector.extract_strided_slice %159 {offsets = [0, 32], sizes = [2, 32], strides = [1, 1]} : vector<2x64xf32> to vector<2x32xf32>
    %162 = vector.extract_strided_slice %11 {offsets = [14, 0], sizes = [2, 256], strides = [1, 1]} : vector<16x256xf32> to vector<2x256xf32>
    %cst_28 = arith.constant dense<0.000000e+00> : vector<2x256xf32>
    %163 = tpu.matmul %159, %12, %cst_28 {dimension_numbers = #tpu.dot_dimension_numbers<[1], [0], [0], [1], [0, 0, 1, 1], [], []>} : vector<2x64xf32>, vector<64x256xf32>, vector<2x256xf32> -> vector<2x256xf32>
    %164 = arith.addf %162, %163 : vector<2x256xf32>
    %165 = vector.extract_strided_slice %164 {offsets = [0, 0], sizes = [2, 192], strides = [1, 1]} : vector<2x256xf32> to vector<2x192xf32>
    %166 = arith.negf %165 : vector<2x192xf32>
    %167 = math.exp %166 : vector<2x192xf32>
    %cst_29 = arith.constant 1.000000e+00 : f32
    %168 = vector.broadcast %cst_29 : f32 to vector<2x192xf32>
    %169 = arith.addf %168, %167 : vector<2x192xf32>
    %170 = arith.divf %168, %169 : vector<2x192xf32>
    %171 = vector.extract_strided_slice %170 {offsets = [0, 0], sizes = [2, 64], strides = [1, 1]} : vector<2x192xf32> to vector<2x64xf32>
    %172 = vector.extract_strided_slice %170 {offsets = [0, 64], sizes = [2, 64], strides = [1, 1]} : vector<2x192xf32> to vector<2x64xf32>
    %173 = vector.extract_strided_slice %170 {offsets = [0, 128], sizes = [2, 64], strides = [1, 1]} : vector<2x192xf32> to vector<2x64xf32>
    %174 = vector.extract_strided_slice %164 {offsets = [0, 192], sizes = [2, 64], strides = [1, 1]} : vector<2x256xf32> to vector<2x64xf32>
    %175 = math.tanh %174 : vector<2x64xf32>
    %176 = arith.mulf %172, %157 : vector<2x64xf32>
    %177 = arith.mulf %171, %175 : vector<2x64xf32>
    %178 = arith.addf %176, %177 : vector<2x64xf32>
    %179 = math.tanh %178 : vector<2x64xf32>
    %180 = arith.mulf %173, %179 : vector<2x64xf32>
    %181 = vector.extract_strided_slice %180 {offsets = [0, 0], sizes = [2, 32], strides = [1, 1]} : vector<2x64xf32> to vector<2x32xf32>
    %182 = vector.extract_strided_slice %180 {offsets = [0, 32], sizes = [2, 32], strides = [1, 1]} : vector<2x64xf32> to vector<2x32xf32>
    %183 = tpu.concatenate %34, %182 in 1 : vector<2x32xf32>, vector<2x32xf32> -> vector<2x64xf32>
    %184 = tpu.concatenate %55, %161 in 1 : vector<2x32xf32>, vector<2x32xf32> -> vector<2x64xf32>
    %185 = tpu.concatenate %76, %140 in 1 : vector<2x32xf32>, vector<2x32xf32> -> vector<2x64xf32>
    %186 = tpu.concatenate %97, %119 in 1 : vector<2x32xf32>, vector<2x32xf32> -> vector<2x64xf32>
    %187 = tpu.concatenate %118, %98 in 1 : vector<2x32xf32>, vector<2x32xf32> -> vector<2x64xf32>
    %188 = tpu.concatenate %139, %77 in 1 : vector<2x32xf32>, vector<2x32xf32> -> vector<2x64xf32>
    %189 = tpu.concatenate %160, %56 in 1 : vector<2x32xf32>, vector<2x32xf32> -> vector<2x64xf32>
    %190 = tpu.concatenate %181, %35 in 1 : vector<2x32xf32>, vector<2x32xf32> -> vector<2x64xf32>
    %191 = tpu.concatenate %183, %184, %185, %186, %187, %188, %189, %190 in 1 : vector<2x64xf32>, vector<2x64xf32>, vector<2x64xf32>, vector<2x64xf32>, vector<2x64xf32>, vector<2x64xf32>, vector<2x64xf32>, vector<2x64xf32> -> vector<2x512xf32>
    %c0_30 = arith.constant 0 : index
    %c0_31 = arith.constant 0 : index
    %192 = vector.load %arg6[%c0_30, %c0_31] : memref<2x512xf32, #tpu.memory_space<vmem>>, vector<2x512xf32>
    tpu.vector_store %arg6[%c0_30, %c0_31], %191 {strides = array<i32>} : memref<2x512xf32, #tpu.memory_space<vmem>>, vector<2x512xf32>,
    return
  }
}

</mosaic_0001>

<llo_original>
// kernel: tpu_custom_call.1
$region0: #{tpu_custom_call.1}
  #allocation0 [shape = 'u32[]', space=smem, size = 0x4, offset = 0x4, fixed_abs, tag = 'smem constant byte address 0x4 - core index']
  #allocation1 [shape = 'u32[72,128]{1,0:T(1,128)}', space=vmem, size = 0x9000, scoped, tag = 'internal scratch']
  %s0 = inlined_call_operand.vmem [shape: f32[16,128], index: 0, kind: input, shape index: {}]
  %s1 = inlined_call_operand.vmem [shape: f32[128,64], index: 1, kind: input, shape index: {}]
  %s2 = inlined_call_operand.vmem [shape: f32[1,64], index: 2, kind: input, shape index: {}]
  %s3 = inlined_call_operand.vmem [shape: f32[64,256], index: 3, kind: input, shape index: {}]
  %s4 = inlined_call_operand.hbm [shape: f32[64,256], index: 4, kind: input, shape index: {}]
  %s5 = inlined_call_operand.vmem [shape: f32[1,256], index: 5, kind: input, shape index: {}]
  %s6 = inlined_call_operand.hbm [shape: f32[2,512], index: 6, kind: output, shape index: {}]
  %s7 = sld [smem:[#allocation0]]
  $region38: #{tpu_custom_call.1} parent=0
    _
  %s9 = ssub.s32 1, %s7
  %s10 = scalar_select 0, %s9, %s7
  $region1: #{tpu_custom_call.1} parent=0
    #allocation2 [shape = 'u8[65536]{0}', space=vmem, size = 0x10000, scoped, tag = 'input window, operand 4, single buffered']
    #allocation3 [shape = 's32[1]{0}', space=sflag, size = 0x4, scoped, tag = 'scoped memory for tpu_custom_call.1']
    #allocation4 [shape = 's32[1]{0}', space=sflag, size = 0x4, scoped, tag = 'scoped memory for tpu_custom_call.1']
    #allocation5 [shape = 'u8[4096]{0}', space=vmem, size = 0x1000, scoped, tag = 'output window, operand 0, single buffered']
    %11 = vsyncpa [#allocation3], 0
    %12 = vsyncpa [#allocation4], 0
    // Predicated region
    $region2: #{tpu_custom_call.1} parent=1 // pred_check
      _
    $region3: #{tpu_custom_call.1} parent=1 // pred_check_branch
      %14 = sbr.rel (0) target = $region5
    $region4: #{tpu_custom_call.1} parent=1 // pred_region
      _
    $region5: #{tpu_custom_call.1} parent=1 // pred_fallthru
      _
    // Predicated region
    $region6: #{tpu_custom_call.1} parent=1 // pred_check
      _
    $region7: #{tpu_custom_call.1} parent=1 // pred_check_branch
      %16 = sbr.rel (0) target = $region9
    $region8: #{tpu_custom_call.1} parent=1 // pred_region
      _
    $region9: #{tpu_custom_call.1} parent=1 // pred_fallthru
      _
    // Predicated region
    $region10: #{tpu_custom_call.1} parent=1 // pred_check
      _
    $region11: #{tpu_custom_call.1} parent=1 // pred_check_branch
      %18 = sbr.rel (0) target = $region13
    $region12: #{tpu_custom_call.1} parent=1 // pred_region
      _
    $region13: #{tpu_custom_call.1} parent=1 // pred_fallthru
      _
    // Predicated region
    $region14: #{tpu_custom_call.1} parent=1 // pred_check
      _
    $region15: #{tpu_custom_call.1} parent=1 // pred_check_branch
      %20 = sbr.rel (0) target = $region17
    $region16: #{tpu_custom_call.1} parent=1 // pred_region
      _
    $region17: #{tpu_custom_call.1} parent=1 // pred_fallthru
      _
    // Predicated region
    $region18: #{tpu_custom_call.1} parent=1 // pred_check
      _
    $region19: #{tpu_custom_call.1} parent=1 // pred_check_branch
      %22 = sbr.rel (0) target = $region21
    $region20: #{tpu_custom_call.1} parent=1 // pred_region
      %24 = vsyncadd [#allocation3], 0
      %s25 = sshll.u32 %s4, 4
      %s26 = int_to_ptr.hbm [resolvable:$true] %s25
      %s27 = sshll.u32 [#allocation2], 4
      %s28 = int_to_ptr.vmem [resolvable:$true] %s27
      %33 = dma.hbm_to_vmem [thread:$0]  %s26, 2048, %s28, [#allocation3], 256, 256, 16
    $region21: #{tpu_custom_call.1} parent=1 // pred_fallthru
      _
    // Predicated region
    $region22: #{tpu_custom_call.1} parent=1 // pred_check
      _
    $region23: #{tpu_custom_call.1} parent=1 // pred_check_branch
      %35 = sbr.rel (0) target = $region25
    $region24: #{tpu_custom_call.1} parent=1 // pred_region
      _
    $region25: #{tpu_custom_call.1} parent=1 // pred_fallthru
      _
    // Predicated region
    $region26: #{tpu_custom_call.1} parent=1 // pred_check
      _
    $region27: #{tpu_custom_call.1} parent=1 // pred_check_branch
      %37 = sbr.rel (0) target = $region29
    $region28: #{tpu_custom_call.1} parent=1 // pred_region
      %39 = dma.done [#allocation3], 2048
    $region29: #{tpu_custom_call.1} parent=1 // pred_fallthru
      _
    %v40 = vld [vmem:[%s0] sm:$0xff]
    %v41 = vld [vmem:[%s0 + $0x8] sm:$0xff]
    %v42 = vld [vmem:[%s1] sm:$0xff]
    %v43 = vld [vmem:[%s1 + $0x8] sm:$0xff]
    %v44 = vld [vmem:[%s1 + $0x10] sm:$0xff]
    %v45 = vld [vmem:[%s1 + $0x18] sm:$0xff]
    %v46 = vld [vmem:[%s1 + $0x20] sm:$0xff]
    %v47 = vld [vmem:[%s1 + $0x28] sm:$0xff]
    %v48 = vld [vmem:[%s1 + $0x30] sm:$0xff]
    %v49 = vld [vmem:[%s1 + $0x38] sm:$0xff]
    %v50 = vld [vmem:[%s1 + $0x40] sm:$0xff]
    %v51 = vld [vmem:[%s1 + $0x48] sm:$0xff]
    %v52 = vld [vmem:[%s1 + $0x50] sm:$0xff]
    %v53 = vld [vmem:[%s1 + $0x58] sm:$0xff]
    %v54 = vld [vmem:[%s1 + $0x60] sm:$0xff]
    %v55 = vld [vmem:[%s1 + $0x68] sm:$0xff]
    %v56 = vld [vmem:[%s1 + $0x70] sm:$0xff]
    %v57 = vld [vmem:[%s1 + $0x78] sm:$0xff]
    %v58 = vld [vmem:[%s2] sm:$0x1]
    %v60 = vperm.slane %v58, 0
    %62 = vmatpush.msra.mxu0 %v57
    %63 = vmatpush.msra.mxu0 %v56
    %64 = vmatpush.msra.mxu0 %v55
    %65 = vmatpush.msra.mxu0 %v54
    %66 = vmatpush.msra.mxu0 %v53
    %67 = vmatpush.msra.mxu0 %v52
    %68 = vmatpush.msra.mxu0 %v51
    %69 = vmatpush.msra.mxu0 %v50
    %70 = vmatpush.msra.mxu0 %v49
    %71 = vmatpush.msra.mxu0 %v48
    %72 = vmatpush.msra.mxu0 %v47
    %73 = vmatpush.msra.mxu0 %v46
    %74 = vmatpush.msra.mxu0 %v45
    %75 = vmatpush.msra.mxu0 %v44
    %76 = vmatpush.msra.mxu0 %v43
    %77 = vmatpush.msra.mxu0 %v42
    %78 = vmatmul.f32.gmra.mxu0 %v40
    %v79 = vpop.f32.mrf.mxu0
    %v80 = vadd.f32 %v60, %v79
    %81 = vmatmul.f32.gmra.mxu0 %v41
    %v82 = vpop.f32.mrf.mxu0
    %v83 = vadd.f32 %v60, %v82
    %84 = vdwg.mxu0
    %v85 = vtanh.pop %v80
    %v86 = vtanh.pop %v83
    %v87 = vld [vmem:[%s3] sm:$0xff]
    %v88 = vld [vmem:[%s3 + $0x8] sm:$0xff]
    %v89 = vld [vmem:[%s3 + $0x10] sm:$0xff]
    %v90 = vld [vmem:[%s3 + $0x18] sm:$0xff]
    %v91 = vld [vmem:[%s3 + $0x20] sm:$0xff]
    %v92 = vld [vmem:[%s3 + $0x28] sm:$0xff]
    %v93 = vld [vmem:[%s3 + $0x30] sm:$0xff]
    %v94 = vld [vmem:[%s3 + $0x38] sm:$0xff]
    %v95 = vld [vmem:[%s3 + $0x40] sm:$0xff]
    %v96 = vld [vmem:[%s3 + $0x48] sm:$0xff]
    %v97 = vld [vmem:[%s3 + $0x50] sm:$0xff]
    %v98 = vld [vmem:[%s3 + $0x58] sm:$0xff]
    %v99 = vld [vmem:[%s3 + $0x60] sm:$0xff]
    %v100 = vld [vmem:[%s3 + $0x68] sm:$0xff]
    %v101 = vld [vmem:[%s3 + $0x70] sm:$0xff]
    %v102 = vld [vmem:[%s3 + $0x78] sm:$0xff]
    %v103 = vld [vmem:[%s5] sm:$0x3]
    %v105 = vperm.slane %v103, 0
    %v106 = vperm.slane %v103, 1
    %vm109 = vcmask 523264
    %v111 = vsel %vm109, %v85, 0
    %v114 = vsel %vm109, %v86, 0
    %116 = vmatpush.msra.mxu0 0.0
    %117 = vmatpush.msra.mxu0 0.0
    %118 = vmatpush.msra.mxu0 0.0
    %119 = vmatpush.msra.mxu0 0.0
    %120 = vmatpush.msra.mxu0 0.0
    %121 = vmatpush.msra.mxu0 0.0
    %122 = vmatpush.msra.mxu0 0.0
    %123 = vmatpush.msra.mxu0 0.0
    %124 = vmatpush.msra.mxu0 %v101
    %125 = vmatpush.msra.mxu0 %v99
    %126 = vmatpush.msra.mxu0 %v97
    %127 = vmatpush.msra.mxu0 %v95
    %128 = vmatpush.msra.mxu0 %v93
    %129 = vmatpush.msra.mxu0 %v91
    %130 = vmatpush.msra.mxu0 %v89
    %131 = vmatpush.msra.mxu0 %v87
    %132 = vmatmul.f32.gmra.mxu0 %v111
    %v133 = vpop.f32.mrf.mxu0
    %v134 = vadd.f32 %v105, %v133
    %135 = vmatmul.f32.gmra.mxu0 %v114
    %v136 = vpop.f32.mrf.mxu0
    %v137 = vadd.f32 %v105, %v136
    %138 = vdwg.mxu0
    %139 = vmatpush.msra.mxu0 0.0
    %140 = vmatpush.msra.mxu0 0.0
    %141 = vmatpush.msra.mxu0 0.0
    %142 = vmatpush.msra.mxu0 0.0
    %143 = vmatpush.msra.mxu0 0.0
    %144 = vmatpush.msra.mxu0 0.0
    %145 = vmatpush.msra.mxu0 0.0
    %146 = vmatpush.msra.mxu0 0.0
    %147 = vmatpush.msra.mxu0 %v102
    %148 = vmatpush.msra.mxu0 %v100
    %149 = vmatpush.msra.mxu0 %v98
    %150 = vmatpush.msra.mxu0 %v96
    %151 = vmatpush.msra.mxu0 %v94
    %152 = vmatpush.msra.mxu0 %v92
    %153 = vmatpush.msra.mxu0 %v90
    %154 = vmatpush.msra.mxu0 %v88
    %155 = vmatmul.f32.gmra.mxu0 %v111
    %v156 = vpop.f32.mrf.mxu0
    %v157 = vadd.f32 %v106, %v156
    %158 = vmatmul.f32.gmra.mxu0 %v114
    %v159 = vpop.f32.mrf.mxu0
    %v160 = vadd.f32 %v106, %v159
    %161 = vdwg.mxu0
    %v162 = vld [vmem:[#allocation2] sm:$0xff]
    %v163 = vld [vmem:[#allocation2 + $0x8] sm:$0xff]
    %v164 = vld [vmem:[#allocation2 + $0x10] sm:$0xff]
    %v165 = vld [vmem:[#allocation2 + $0x18] sm:$0xff]
    %v166 = vld [vmem:[#allocation2 + $0x20] sm:$0xff]
    %v167 = vld [vmem:[#allocation2 + $0x28] sm:$0xff]
    %v168 = vld [vmem:[#allocation2 + $0x30] sm:$0xff]
    %v169 = vld [vmem:[#allocation2 + $0x38] sm:$0xff]
    %v170 = vld [vmem:[#allocation2 + $0x40] sm:$0xff]
    %v171 = vld [vmem:[#allocation2 + $0x48] sm:$0xff]
    %v172 = vld [vmem:[#allocation2 + $0x50] sm:$0xff]
    %v173 = vld [vmem:[#allocation2 + $0x58] sm:$0xff]
    %v174 = vld [vmem:[#allocation2 + $0x60] sm:$0xff]
    %v175 = vld [vmem:[#allocation2 + $0x68] sm:$0xff]
    %v176 = vld [vmem:[#allocation2 + $0x70] sm:$0xff]
    %v177 = vld [vmem:[#allocation2 + $0x78] sm:$0xff]
    %v179 = vsel %vm109, 0.0, 0
    %181 = vmatpush.msra.mxu0 0.0
    %182 = vmatpush.msra.mxu0 0.0
    %183 = vmatpush.msra.mxu0 0.0
    %184 = vmatpush.msra.mxu0 0.0
    %185 = vmatpush.msra.mxu0 0.0
    %186 = vmatpush.msra.mxu0 0.0
    %187 = vmatpush.msra.mxu0 0.0
    %188 = vmatpush.msra.mxu0 0.0
    %189 = vmatpush.msra.mxu0 %v176
    %190 = vmatpush.msra.mxu0 %v174
    %191 = vmatpush.msra.mxu0 %v172
    %192 = vmatpush.msra.mxu0 %v170
    %193 = vmatpush.msra.mxu0 %v168
    %194 = vmatpush.msra.mxu0 %v166
    %195 = vmatpush.msra.mxu0 %v164
    %196 = vmatpush.msra.mxu0 %v162
    %197 = vmatmul.f32.gmra.mxu0 %v179
    %v198 = vpop.f32.mrf.mxu0
    %v199 = vadd.f32 0.0, %v198
    %200 = vdwg.mxu0
    %201 = vmatpush.msra.mxu0 0.0
    %202 = vmatpush.msra.mxu0 0.0
    %203 = vmatpush.msra.mxu0 0.0
    %204 = vmatpush.msra.mxu0 0.0
    %205 = vmatpush.msra.mxu0 0.0
    %206 = vmatpush.msra.mxu0 0.0
    %207 = vmatpush.msra.mxu0 0.0
    %208 = vmatpush.msra.mxu0 0.0
    %209 = vmatpush.msra.mxu0 %v177
    %210 = vmatpush.msra.mxu0 %v175
    %211 = vmatpush.msra.mxu0 %v173
    %212 = vmatpush.msra.mxu0 %v171
    %213 = vmatpush.msra.mxu0 %v169
    %214 = vmatpush.msra.mxu0 %v167
    %215 = vmatpush.msra.mxu0 %v165
    %216 = vmatpush.msra.mxu0 %v163
    %217 = vmatmul.f32.gmra.mxu0 %v179
    %v218 = vpop.f32.mrf.mxu0
    %v219 = vadd.f32 0.0, %v218
    %220 = vdwg.mxu0
    %v221 = vadd.f32 %v134, %v199
    %v222 = vadd.f32 %v157, %v219
    %v223 = vxor.u32 %v221, 2147483648
    %v224 = vxor.u32 %v222, 2147483648
    %v225 = vmul.f32 %v223, 1.442695
    %v226 = vpow.pop %v225
    %v227 = vmul.f32 %v224, 1.442695
    %v228 = vpow.pop %v227
    %v229 = vadd.f32 %v226, 1.0
    %v230 = vadd.f32 %v228, 1.0
    %v231 = vrcp.pop %v229
    %v232 = vmul.f32 %v229, %v231
    %v233 = vsub.f32 1.0, %v232
    %v234 = vmul.f32 %v231, %v233
    %v235 = vadd.f32 %v231, %v234
    %vm236 = vweird.f32 %v229
    %vm237 = vweird.f32 %v231
    %vm238 = vmor %vm236, %vm237
    %v239 = vsel %vm238, %v231, %v235
    %v240 = vand.u32 2147483647, %v229
    %vm241 = vcmp.eq.f32.partialorder %v240, 8.507059e+37
    %v242 = vand.u32 %v229, 2147483648
    %v243 = vor.u32 1.1754944e-38, %v242
    %v244 = vsel %vm241, %v243, %v239
    %v245 = vmul.f32 1.0, %v244
    %v246 = vrcp.pop %v230
    %v247 = vmul.f32 %v230, %v246
    %v248 = vsub.f32 1.0, %v247
    %v249 = vmul.f32 %v246, %v248
    %v250 = vadd.f32 %v246, %v249
    %vm251 = vweird.f32 %v230
    %vm252 = vweird.f32 %v246
    %vm253 = vmor %vm251, %vm252
    %v254 = vsel %vm253, %v246, %v250
    %v255 = vand.u32 2147483647, %v230
    %vm256 = vcmp.eq.f32.partialorder %v255, 8.507059e+37
    %v257 = vand.u32 %v230, 2147483648
    %v258 = vor.u32 1.1754944e-38, %v257
    %v259 = vsel %vm256, %v258, %v254
    %v260 = vmul.f32 1.0, %v259
    %v261 = vtanh.pop %v222
    %v262 = vmul.f32 %v245, 0.0
    %264 = vrot.lane.b32.xlu0 %v261, 64
    %v265 = vpop.permute.xlu0 %264
    %v267 = vmul.f32 %v245, %v265
    %269 = vrot.lane.b32.xlu0 %v267, 64
    %v270 = vpop.permute.xlu0 %269
    %v272 = vadd.f32 %v262, %v270
    %v273 = vtanh.pop %v272
    %275 = vrot.lane.b32.xlu0 %v273, 64
    %v276 = vpop.permute.xlu0 %275
    %v278 = vmul.f32 %v260, %v276
    %v280 = vsel %vm109, %v278, 0
    %282 = vmatpush.msra.mxu0 0.0
    %283 = vmatpush.msra.mxu0 0.0
    %284 = vmatpush.msra.mxu0 0.0
    %285 = vmatpush.msra.mxu0 0.0
    %286 = vmatpush.msra.mxu0 0.0
    %287 = vmatpush.msra.mxu0 0.0
    %288 = vmatpush.msra.mxu0 0.0
    %289 = vmatpush.msra.mxu0 0.0
    %290 = vmatpush.msra.mxu0 %v176
    %291 = vmatpush.msra.mxu0 %v174
    %292 = vmatpush.msra.mxu0 %v172
    %293 = vmatpush.msra.mxu0 %v170
    %294 = vmatpush.msra.mxu0 %v168
    %295 = vmatpush.msra.mxu0 %v166
    %296 = vmatpush.msra.mxu0 %v164
    %297 = vmatpush.msra.mxu0 %v162
    %298 = vmatmul.f32.gmra.mxu0 %v280
    %v299 = vpop.f32.mrf.mxu0
    %v300 = vadd.f32 0.0, %v299
    %301 = vdwg.mxu0
    %302 = vmatpush.msra.mxu0 0.0
    %303 = vmatpush.msra.mxu0 0.0
    %304 = vmatpush.msra.mxu0 0.0
    %305 = vmatpush.msra.mxu0 0.0
    %306 = vmatpush.msra.mxu0 0.0
    %307 = vmatpush.msra.mxu0 0.0
    %308 = vmatpush.msra.mxu0 0.0
    %309 = vmatpush.msra.mxu0 0.0
    %310 = vmatpush.msra.mxu0 %v177
    %311 = vmatpush.msra.mxu0 %v175
    %312 = vmatpush.msra.mxu0 %v173
    %313 = vmatpush.msra.mxu0 %v171
    %314 = vmatpush.msra.mxu0 %v169
    %315 = vmatpush.msra.mxu0 %v167
    %316 = vmatpush.msra.mxu0 %v165
    %317 = vmatpush.msra.mxu0 %v163
    %318 = vmatmul.f32.gmra.mxu0 %v280
    %v319 = vpop.f32.mrf.mxu0
    %v320 = vadd.f32 0.0, %v319
    %321 = vdwg.mxu0
    %v324 = vrot.slane %v300, 6
    %v325 = vrot.slane %v320, 6
    %v328 = vadd.f32 %v134, %v324
    %v329 = vadd.f32 %v157, %v325
    %v330 = vxor.u32 %v328, 2147483648
    %v331 = vxor.u32 %v329, 2147483648
    %v332 = vmul.f32 %v330, 1.442695
    %v333 = vpow.pop %v332
    %v334 = vmul.f32 %v331, 1.442695
    %v335 = vpow.pop %v334
    %v336 = vadd.f32 %v333, 1.0
    %v337 = vadd.f32 %v335, 1.0
    %v338 = vrcp.pop %v336
    %v339 = vmul.f32 %v336, %v338
    %v340 = vsub.f32 1.0, %v339
    %v341 = vmul.f32 %v338, %v340
    %v342 = vadd.f32 %v338, %v341
    %vm343 = vweird.f32 %v336
    %vm344 = vweird.f32 %v338
    %vm345 = vmor %vm343, %vm344
    %v346 = vsel %vm345, %v338, %v342
    %v347 = vand.u32 2147483647, %v336
    %vm348 = vcmp.eq.f32.partialorder %v347, 8.507059e+37
    %v349 = vand.u32 %v336, 2147483648
    %v350 = vor.u32 1.1754944e-38, %v349
    %v351 = vsel %vm348, %v350, %v346
    %v352 = vmul.f32 1.0, %v351
    %v353 = vrcp.pop %v337
    %v354 = vmul.f32 %v337, %v353
    %v355 = vsub.f32 1.0, %v354
    %v356 = vmul.f32 %v353, %v355
    %v357 = vadd.f32 %v353, %v356
    %vm358 = vweird.f32 %v337
    %vm359 = vweird.f32 %v353
    %vm360 = vmor %vm358, %vm359
    %v361 = vsel %vm360, %v353, %v357
    %v362 = vand.u32 2147483647, %v337
    %vm363 = vcmp.eq.f32.partialorder %v362, 8.507059e+37
    %v364 = vand.u32 %v337, 2147483648
    %v365 = vor.u32 1.1754944e-38, %v364
    %v366 = vsel %vm363, %v365, %v361
    %v367 = vmul.f32 1.0, %v366
    %v368 = vtanh.pop %v329
    %v370 = vrot.slane %v272, 6
    %v372 = vmul.f32 %v352, %v370
    %374 = vrot.lane.b32.xlu0 %v368, 64
    %v375 = vpop.permute.xlu0 %374
    %v377 = vmul.f32 %v352, %v375
    %379 = vrot.lane.b32.xlu0 %v377, 64
    %v380 = vpop.permute.xlu0 %379
    %v382 = vadd.f32 %v372, %v380
    %v383 = vtanh.pop %v382
    %385 = vrot.lane.b32.xlu0 %v383, 64
    %v386 = vpop.permute.xlu0 %385
    %v388 = vmul.f32 %v367, %v386
    %v390 = vrot.slane %v388, 2
    %v391 = vsel %vm109, %v390, 0
    %393 = vmatpush.msra.mxu0 0.0
    %394 = vmatpush.msra.mxu0 0.0
    %395 = vmatpush.msra.mxu0 0.0
    %396 = vmatpush.msra.mxu0 0.0
    %397 = vmatpush.msra.mxu0 0.0
    %398 = vmatpush.msra.mxu0 0.0
    %399 = vmatpush.msra.mxu0 0.0
    %400 = vmatpush.msra.mxu0 0.0
    %401 = vmatpush.msra.mxu0 %v176
    %402 = vmatpush.msra.mxu0 %v174
    %403 = vmatpush.msra.mxu0 %v172
    %404 = vmatpush.msra.mxu0 %v170
    %405 = vmatpush.msra.mxu0 %v168
    %406 = vmatpush.msra.mxu0 %v166
    %407 = vmatpush.msra.mxu0 %v164
    %408 = vmatpush.msra.mxu0 %v162
    %409 = vmatmul.f32.gmra.mxu0 %v391
    %v410 = vpop.f32.mrf.mxu0
    %v411 = vadd.f32 0.0, %v410
    %412 = vdwg.mxu0
    %413 = vmatpush.msra.mxu0 0.0
    %414 = vmatpush.msra.mxu0 0.0
    %415 = vmatpush.msra.mxu0 0.0
    %416 = vmatpush.msra.mxu0 0.0
    %417 = vmatpush.msra.mxu0 0.0
    %418 = vmatpush.msra.mxu0 0.0
    %419 = vmatpush.msra.mxu0 0.0
    %420 = vmatpush.msra.mxu0 0.0
    %421 = vmatpush.msra.mxu0 %v177
    %422 = vmatpush.msra.mxu0 %v175
    %423 = vmatpush.msra.mxu0 %v173
    %424 = vmatpush.msra.mxu0 %v171
    %425 = vmatpush.msra.mxu0 %v169
    %426 = vmatpush.msra.mxu0 %v167
    %427 = vmatpush.msra.mxu0 %v165
    %428 = vmatpush.msra.mxu0 %v163
    %429 = vmatmul.f32.gmra.mxu0 %v391
    %v430 = vpop.f32.mrf.mxu0
    %v431 = vadd.f32 0.0, %v430
    %432 = vdwg.mxu0
    %v435 = vrot.slane %v411, 4
    %v436 = vrot.slane %v431, 4
    %v439 = vadd.f32 %v134, %v435
    %v440 = vadd.f32 %v157, %v436
    %v441 = vxor.u32 %v439, 2147483648
    %v442 = vxor.u32 %v440, 2147483648
    %v443 = vmul.f32 %v441, 1.442695
    %v444 = vpow.pop %v443
    %v445 = vmul.f32 %v442, 1.442695
    %v446 = vpow.pop %v445
    %v447 = vadd.f32 %v444, 1.0
    %v448 = vadd.f32 %v446, 1.0
    %v449 = vrcp.pop %v447
    %v450 = vmul.f32 %v447, %v449
    %v451 = vsub.f32 1.0, %v450
    %v452 = vmul.f32 %v449, %v451
    %v453 = vadd.f32 %v449, %v452
    %vm454 = vweird.f32 %v447
    %vm455 = vweird.f32 %v449
    %vm456 = vmor %vm454, %vm455
    %v457 = vsel %vm456, %v449, %v453
    %v458 = vand.u32 2147483647, %v447
    %vm459 = vcmp.eq.f32.partialorder %v458, 8.507059e+37
    %v460 = vand.u32 %v447, 2147483648
    %v461 = vor.u32 1.1754944e-38, %v460
    %v462 = vsel %vm459, %v461, %v457
    %v463 = vmul.f32 1.0, %v462
    %v464 = vrcp.pop %v448
    %v465 = vmul.f32 %v448, %v464
    %v466 = vsub.f32 1.0, %v465
    %v467 = vmul.f32 %v464, %v466
    %v468 = vadd.f32 %v464, %v467
    %vm469 = vweird.f32 %v448
    %vm470 = vweird.f32 %v464
    %vm471 = vmor %vm469, %vm470
    %v472 = vsel %vm471, %v464, %v468
    %v473 = vand.u32 2147483647, %v448
    %vm474 = vcmp.eq.f32.partialorder %v473, 8.507059e+37
    %v475 = vand.u32 %v448, 2147483648
    %v476 = vor.u32 1.1754944e-38, %v475
    %v477 = vsel %vm474, %v476, %v472
    %v478 = vmul.f32 1.0, %v477
    %v479 = vtanh.pop %v440
    %v481 = vrot.slane %v382, 6
    %v483 = vmul.f32 %v463, %v481
    %485 = vrot.lane.b32.xlu0 %v479, 64
    %v486 = vpop.permute.xlu0 %485
    %v488 = vmul.f32 %v463, %v486
    %490 = vrot.lane.b32.xlu0 %v488, 64
    %v491 = vpop.permute.xlu0 %490
    %v493 = vadd.f32 %v483, %v491
    %v494 = vtanh.pop %v493
    %496 = vrot.lane.b32.xlu0 %v494, 64
    %v497 = vpop.permute.xlu0 %496
    %v499 = vmul.f32 %v478, %v497
    %v501 = vrot.slane %v499, 4
    %v502 = vsel %vm109, %v501, 0
    %504 = vmatpush.msra.mxu0 0.0
    %505 = vmatpush.msra.mxu0 0.0
    %506 = vmatpush.msra.mxu0 0.0
    %507 = vmatpush.msra.mxu0 0.0
    %508 = vmatpush.msra.mxu0 0.0
    %509 = vmatpush.msra.mxu0 0.0
    %510 = vmatpush.msra.mxu0 0.0
    %511 = vmatpush.msra.mxu0 0.0
    %512 = vmatpush.msra.mxu0 %v176
    %513 = vmatpush.msra.mxu0 %v174
    %514 = vmatpush.msra.mxu0 %v172
    %515 = vmatpush.msra.mxu0 %v170
    %516 = vmatpush.msra.mxu0 %v168
    %517 = vmatpush.msra.mxu0 %v166
    %518 = vmatpush.msra.mxu0 %v164
    %519 = vmatpush.msra.mxu0 %v162
    %520 = vmatmul.f32.gmra.mxu0 %v502
    %v521 = vpop.f32.mrf.mxu0
    %v522 = vadd.f32 0.0, %v521
    %523 = vdwg.mxu0
    %524 = vmatpush.msra.mxu0 0.0
    %525 = vmatpush.msra.mxu0 0.0
    %526 = vmatpush.msra.mxu0 0.0
    %527 = vmatpush.msra.mxu0 0.0
    %528 = vmatpush.msra.mxu0 0.0
    %529 = vmatpush.msra.mxu0 0.0
    %530 = vmatpush.msra.mxu0 0.0
    %531 = vmatpush.msra.mxu0 0.0
    %532 = vmatpush.msra.mxu0 %v177
    %533 = vmatpush.msra.mxu0 %v175
    %534 = vmatpush.msra.mxu0 %v173
    %535 = vmatpush.msra.mxu0 %v171
    %536 = vmatpush.msra.mxu0 %v169
    %537 = vmatpush.msra.mxu0 %v167
    %538 = vmatpush.msra.mxu0 %v165
    %539 = vmatpush.msra.mxu0 %v163
    %540 = vmatmul.f32.gmra.mxu0 %v502
    %v541 = vpop.f32.mrf.mxu0
    %v542 = vadd.f32 0.0, %v541
    %543 = vdwg.mxu0
    %v546 = vrot.slane %v522, 2
    %v547 = vrot.slane %v542, 2
    %v550 = vadd.f32 %v134, %v546
    %v551 = vadd.f32 %v157, %v547
    %v552 = vxor.u32 %v550, 2147483648
    %v553 = vxor.u32 %v551, 2147483648
    %v554 = vmul.f32 %v552, 1.442695
    %v555 = vpow.pop %v554
    %v556 = vmul.f32 %v553, 1.442695
    %v557 = vpow.pop %v556
    %v558 = vadd.f32 %v555, 1.0
    %v559 = vadd.f32 %v557, 1.0
    %v560 = vrcp.pop %v558
    %v561 = vmul.f32 %v558, %v560
    %v562 = vsub.f32 1.0, %v561
    %v563 = vmul.f32 %v560, %v562
    %v564 = vadd.f32 %v560, %v563
    %vm565 = vweird.f32 %v558
    %vm566 = vweird.f32 %v560
    %vm567 = vmor %vm565, %vm566
    %v568 = vsel %vm567, %v560, %v564
    %v569 = vand.u32 2147483647, %v558
    %vm570 = vcmp.eq.f32.partialorder %v569, 8.507059e+37
    %v571 = vand.u32 %v558, 2147483648
    %v572 = vor.u32 1.1754944e-38, %v571
    %v573 = vsel %vm570, %v572, %v568
    %v574 = vmul.f32 1.0, %v573
    %v575 = vrcp.pop %v559
    %v576 = vmul.f32 %v559, %v575
    %v577 = vsub.f32 1.0, %v576
    %v578 = vmul.f32 %v575, %v577
    %v579 = vadd.f32 %v575, %v578
    %vm580 = vweird.f32 %v559
    %vm581 = vweird.f32 %v575
    %vm582 = vmor %vm580, %vm581
    %v583 = vsel %vm582, %v575, %v579
    %v584 = vand.u32 2147483647, %v559
    %vm585 = vcmp.eq.f32.partialorder %v584, 8.507059e+37
    %v586 = vand.u32 %v559, 2147483648
    %v587 = vor.u32 1.1754944e-38, %v586
    %v588 = vsel %vm585, %v587, %v583
    %v589 = vmul.f32 1.0, %v588
    %v590 = vtanh.pop %v551
    %v592 = vrot.slane %v493, 6
    %v594 = vmul.f32 %v574, %v592
    %596 = vrot.lane.b32.xlu0 %v590, 64
    %v597 = vpop.permute.xlu0 %596
    %v599 = vmul.f32 %v574, %v597
    %601 = vrot.lane.b32.xlu0 %v599, 64
    %v602 = vpop.permute.xlu0 %601
    %v604 = vadd.f32 %v594, %v602
    %v605 = vtanh.pop %v604
    %607 = vrot.lane.b32.xlu0 %v605, 64
    %v608 = vpop.permute.xlu0 %607
    %v610 = vmul.f32 %v589, %v608
    %v612 = vrot.slane %v610, 6
    %v613 = vsel %vm109, %v612, 0
    %615 = vmatpush.msra.mxu0 0.0
    %616 = vmatpush.msra.mxu0 0.0
    %617 = vmatpush.msra.mxu0 0.0
    %618 = vmatpush.msra.mxu0 0.0
    %619 = vmatpush.msra.mxu0 0.0
    %620 = vmatpush.msra.mxu0 0.0
    %621 = vmatpush.msra.mxu0 0.0
    %622 = vmatpush.msra.mxu0 0.0
    %623 = vmatpush.msra.mxu0 %v176
    %624 = vmatpush.msra.mxu0 %v174
    %625 = vmatpush.msra.mxu0 %v172
    %626 = vmatpush.msra.mxu0 %v170
    %627 = vmatpush.msra.mxu0 %v168
    %628 = vmatpush.msra.mxu0 %v166
    %629 = vmatpush.msra.mxu0 %v164
    %630 = vmatpush.msra.mxu0 %v162
    %631 = vmatmul.f32.gmra.mxu0 %v613
    %v632 = vpop.f32.mrf.mxu0
    %v633 = vadd.f32 0.0, %v632
    %634 = vdwg.mxu0
    %635 = vmatpush.msra.mxu0 0.0
    %636 = vmatpush.msra.mxu0 0.0
    %637 = vmatpush.msra.mxu0 0.0
    %638 = vmatpush.msra.mxu0 0.0
    %639 = vmatpush.msra.mxu0 0.0
    %640 = vmatpush.msra.mxu0 0.0
    %641 = vmatpush.msra.mxu0 0.0
    %642 = vmatpush.msra.mxu0 0.0
    %643 = vmatpush.msra.mxu0 %v177
    %644 = vmatpush.msra.mxu0 %v175
    %645 = vmatpush.msra.mxu0 %v173
    %646 = vmatpush.msra.mxu0 %v171
    %647 = vmatpush.msra.mxu0 %v169
    %648 = vmatpush.msra.mxu0 %v167
    %649 = vmatpush.msra.mxu0 %v165
    %650 = vmatpush.msra.mxu0 %v163
    %651 = vmatmul.f32.gmra.mxu0 %v613
    %v652 = vpop.f32.mrf.mxu0
    %v653 = vadd.f32 0.0, %v652
    %654 = vdwg.mxu0
    %v655 = vadd.f32 %v137, %v633
    %v656 = vadd.f32 %v160, %v653
    %v657 = vxor.u32 %v655, 2147483648
    %v658 = vxor.u32 %v656, 2147483648
    %v659 = vmul.f32 %v657, 1.442695
    %v660 = vpow.pop %v659
    %v661 = vmul.f32 %v658, 1.442695
    %v662 = vpow.pop %v661
    %v663 = vadd.f32 %v660, 1.0
    %v664 = vadd.f32 %v662, 1.0
    %v665 = vrcp.pop %v663
    %v666 = vmul.f32 %v663, %v665
    %v667 = vsub.f32 1.0, %v666
    %v668 = vmul.f32 %v665, %v667
    %v669 = vadd.f32 %v665, %v668
    %vm670 = vweird.f32 %v663
    %vm671 = vweird.f32 %v665
    %vm672 = vmor %vm670, %vm671
    %v673 = vsel %vm672, %v665, %v669
    %v674 = vand.u32 2147483647, %v663
    %vm675 = vcmp.eq.f32.partialorder %v674, 8.507059e+37
    %v676 = vand.u32 %v663, 2147483648
    %v677 = vor.u32 1.1754944e-38, %v676
    %v678 = vsel %vm675, %v677, %v673
    %v679 = vmul.f32 1.0, %v678
    %v680 = vrcp.pop %v664
    %v681 = vmul.f32 %v664, %v680
    %v682 = vsub.f32 1.0, %v681
    %v683 = vmul.f32 %v680, %v682
    %v684 = vadd.f32 %v680, %v683
    %vm685 = vweird.f32 %v664
    %vm686 = vweird.f32 %v680
    %vm687 = vmor %vm685, %vm686
    %v688 = vsel %vm687, %v680, %v684
    %v689 = vand.u32 2147483647, %v664
    %vm690 = vcmp.eq.f32.partialorder %v689, 8.507059e+37
    %v691 = vand.u32 %v664, 2147483648
    %v692 = vor.u32 1.1754944e-38, %v691
    %v693 = vsel %vm690, %v692, %v688
    %v694 = vmul.f32 1.0, %v693
    %v695 = vtanh.pop %v656
    %v697 = vrot.slane %v604, 6
    %v699 = vmul.f32 %v679, %v697
    %701 = vrot.lane.b32.xlu0 %v695, 64
    %v702 = vpop.permute.xlu0 %701
    %v704 = vmul.f32 %v679, %v702
    %706 = vrot.lane.b32.xlu0 %v704, 64
    %v707 = vpop.permute.xlu0 %706
    %v709 = vadd.f32 %v699, %v707
    %v710 = vtanh.pop %v709
    %712 = vrot.lane.b32.xlu0 %v710, 64
    %v713 = vpop.permute.xlu0 %712
    %v715 = vmul.f32 %v694, %v713
    %v717 = vsel %vm109, %v715, 0
    %719 = vmatpush.msra.mxu0 0.0
    %720 = vmatpush.msra.mxu0 0.0
    %721 = vmatpush.msra.mxu0 0.0
    %722 = vmatpush.msra.mxu0 0.0
    %723 = vmatpush.msra.mxu0 0.0
    %724 = vmatpush.msra.mxu0 0.0
    %725 = vmatpush.msra.mxu0 0.0
    %726 = vmatpush.msra.mxu0 0.0
    %727 = vmatpush.msra.mxu0 %v176
    %728 = vmatpush.msra.mxu0 %v174
    %729 = vmatpush.msra.mxu0 %v172
    %730 = vmatpush.msra.mxu0 %v170
    %731 = vmatpush.msra.mxu0 %v168
    %732 = vmatpush.msra.mxu0 %v166
    %733 = vmatpush.msra.mxu0 %v164
    %734 = vmatpush.msra.mxu0 %v162
    %735 = vmatmul.f32.gmra.mxu0 %v717
    %v736 = vpop.f32.mrf.mxu0
    %v737 = vadd.f32 0.0, %v736
    %738 = vdwg.mxu0
    %739 = vmatpush.msra.mxu0 0.0
    %740 = vmatpush.msra.mxu0 0.0
    %741 = vmatpush.msra.mxu0 0.0
    %742 = vmatpush.msra.mxu0 0.0
    %743 = vmatpush.msra.mxu0 0.0
    %744 = vmatpush.msra.mxu0 0.0
    %745 = vmatpush.msra.mxu0 0.0
    %746 = vmatpush.msra.mxu0 0.0
    %747 = vmatpush.msra.mxu0 %v177
    %748 = vmatpush.msra.mxu0 %v175
    %749 = vmatpush.msra.mxu0 %v173
    %750 = vmatpush.msra.mxu0 %v171
    %751 = vmatpush.msra.mxu0 %v169
    %752 = vmatpush.msra.mxu0 %v167
    %753 = vmatpush.msra.mxu0 %v165
    %754 = vmatpush.msra.mxu0 %v163
    %755 = vmatmul.f32.gmra.mxu0 %v717
    %v756 = vpop.f32.mrf.mxu0
    %v757 = vadd.f32 0.0, %v756
    %758 = vdwg.mxu0
    %v761 = vrot.slane %v737, 6
    %v762 = vrot.slane %v757, 6
    %v765 = vadd.f32 %v137, %v761
    %v766 = vadd.f32 %v160, %v762
    %v767 = vxor.u32 %v765, 2147483648
    %v768 = vxor.u32 %v766, 2147483648
    %v769 = vmul.f32 %v767, 1.442695
    %v770 = vpow.pop %v769
    %v771 = vmul.f32 %v768, 1.442695
    %v772 = vpow.pop %v771
    %v773 = vadd.f32 %v770, 1.0
    %v774 = vadd.f32 %v772, 1.0
    %v775 = vrcp.pop %v773
    %v776 = vmul.f32 %v773, %v775
    %v777 = vsub.f32 1.0, %v776
    %v778 = vmul.f32 %v775, %v777
    %v779 = vadd.f32 %v775, %v778
    %vm780 = vweird.f32 %v773
    %vm781 = vweird.f32 %v775
    %vm782 = vmor %vm780, %vm781
    %v783 = vsel %vm782, %v775, %v779
    %v784 = vand.u32 2147483647, %v773
    %vm785 = vcmp.eq.f32.partialorder %v784, 8.507059e+37
    %v786 = vand.u32 %v773, 2147483648
    %v787 = vor.u32 1.1754944e-38, %v786
    %v788 = vsel %vm785, %v787, %v783
    %v789 = vmul.f32 1.0, %v788
    %v790 = vrcp.pop %v774
    %v791 = vmul.f32 %v774, %v790
    %v792 = vsub.f32 1.0, %v791
    %v793 = vmul.f32 %v790, %v792
    %v794 = vadd.f32 %v790, %v793
    %vm795 = vweird.f32 %v774
    %vm796 = vweird.f32 %v790
    %vm797 = vmor %vm795, %vm796
    %v798 = vsel %vm797, %v790, %v794
    %v799 = vand.u32 2147483647, %v774
    %vm800 = vcmp.eq.f32.partialorder %v799, 8.507059e+37
    %v801 = vand.u32 %v774, 2147483648
    %v802 = vor.u32 1.1754944e-38, %v801
    %v803 = vsel %vm800, %v802, %v798
    %v804 = vmul.f32 1.0, %v803
    %v805 = vtanh.pop %v766
    %v807 = vrot.slane %v709, 6
    %v809 = vmul.f32 %v789, %v807
    %811 = vrot.lane.b32.xlu0 %v805, 64
    %v812 = vpop.permute.xlu0 %811
    %v814 = vmul.f32 %v789, %v812
    %816 = vrot.lane.b32.xlu0 %v814, 64
    %v817 = vpop.permute.xlu0 %816
    %v819 = vadd.f32 %v809, %v817
    %v820 = vtanh.pop %v819
    %822 = vrot.lane.b32.xlu0 %v820, 64
    %v823 = vpop.permute.xlu0 %822
    %v825 = vmul.f32 %v804, %v823
    %v827 = vrot.slane %v825, 2
    %v828 = vsel %vm109, %v827, 0
    %830 = vmatpush.msra.mxu0 0.0
    %831 = vmatpush.msra.mxu0 0.0
    %832 = vmatpush.msra.mxu0 0.0
    %833 = vmatpush.msra.mxu0 0.0
    %834 = vmatpush.msra.mxu0 0.0
    %835 = vmatpush.msra.mxu0 0.0
    %836 = vmatpush.msra.mxu0 0.0
    %837 = vmatpush.msra.mxu0 0.0
    %838 = vmatpush.msra.mxu0 %v176
    %839 = vmatpush.msra.mxu0 %v174
    %840 = vmatpush.msra.mxu0 %v172
    %841 = vmatpush.msra.mxu0 %v170
    %842 = vmatpush.msra.mxu0 %v168
    %843 = vmatpush.msra.mxu0 %v166
    %844 = vmatpush.msra.mxu0 %v164
    %845 = vmatpush.msra.mxu0 %v162
    %846 = vmatmul.f32.gmra.mxu0 %v828
    %v847 = vpop.f32.mrf.mxu0
    %v848 = vadd.f32 0.0, %v847
    %849 = vdwg.mxu0
    %850 = vmatpush.msra.mxu0 0.0
    %851 = vmatpush.msra.mxu0 0.0
    %852 = vmatpush.msra.mxu0 0.0
    %853 = vmatpush.msra.mxu0 0.0
    %854 = vmatpush.msra.mxu0 0.0
    %855 = vmatpush.msra.mxu0 0.0
    %856 = vmatpush.msra.mxu0 0.0
    %857 = vmatpush.msra.mxu0 0.0
    %858 = vmatpush.msra.mxu0 %v177
    %859 = vmatpush.msra.mxu0 %v175
    %860 = vmatpush.msra.mxu0 %v173
    %861 = vmatpush.msra.mxu0 %v171
    %862 = vmatpush.msra.mxu0 %v169
    %863 = vmatpush.msra.mxu0 %v167
    %864 = vmatpush.msra.mxu0 %v165
    %865 = vmatpush.msra.mxu0 %v163
    %866 = vmatmul.f32.gmra.mxu0 %v828
    %v867 = vpop.f32.mrf.mxu0
    %v868 = vadd.f32 0.0, %v867
    %869 = vdwg.mxu0
    %v872 = vrot.slane %v848, 4
    %v873 = vrot.slane %v868, 4
    %v876 = vadd.f32 %v137, %v872
    %v877 = vadd.f32 %v160, %v873
    %v878 = vxor.u32 %v876, 2147483648
    %v879 = vxor.u32 %v877, 2147483648
    %v880 = vmul.f32 %v878, 1.442695
    %v881 = vpow.pop %v880
    %v882 = vmul.f32 %v879, 1.442695
    %v883 = vpow.pop %v882
    %v884 = vadd.f32 %v881, 1.0
    %v885 = vadd.f32 %v883, 1.0
    %v886 = vrcp.pop %v884
    %v887 = vmul.f32 %v884, %v886
    %v888 = vsub.f32 1.0, %v887
    %v889 = vmul.f32 %v886, %v888
    %v890 = vadd.f32 %v886, %v889
    %vm891 = vweird.f32 %v884
    %vm892 = vweird.f32 %v886
    %vm893 = vmor %vm891, %vm892
    %v894 = vsel %vm893, %v886, %v890
    %v895 = vand.u32 2147483647, %v884
    %vm896 = vcmp.eq.f32.partialorder %v895, 8.507059e+37
    %v897 = vand.u32 %v884, 2147483648
    %v898 = vor.u32 1.1754944e-38, %v897
    %v899 = vsel %vm896, %v898, %v894
    %v900 = vmul.f32 1.0, %v899
    %v901 = vrcp.pop %v885
    %v902 = vmul.f32 %v885, %v901
    %v903 = vsub.f32 1.0, %v902
    %v904 = vmul.f32 %v901, %v903
    %v905 = vadd.f32 %v901, %v904
    %vm906 = vweird.f32 %v885
    %vm907 = vweird.f32 %v901
    %vm908 = vmor %vm906, %vm907
    %v909 = vsel %vm908, %v901, %v905
    %v910 = vand.u32 2147483647, %v885
    %vm911 = vcmp.eq.f32.partialorder %v910, 8.507059e+37
    %v912 = vand.u32 %v885, 2147483648
    %v913 = vor.u32 1.1754944e-38, %v912
    %v914 = vsel %vm911, %v913, %v909
    %v915 = vmul.f32 1.0, %v914
    %v916 = vtanh.pop %v877
    %v918 = vrot.slane %v819, 6
    %v920 = vmul.f32 %v900, %v918
    %922 = vrot.lane.b32.xlu0 %v916, 64
    %v923 = vpop.permute.xlu0 %922
    %v925 = vmul.f32 %v900, %v923
    %927 = vrot.lane.b32.xlu0 %v925, 64
    %v928 = vpop.permute.xlu0 %927
    %v930 = vadd.f32 %v920, %v928
    %v931 = vtanh.pop %v930
    %933 = vrot.lane.b32.xlu0 %v931, 64
    %v934 = vpop.permute.xlu0 %933
    %v936 = vmul.f32 %v915, %v934
    %v938 = vrot.slane %v936, 4
    %v939 = vsel %vm109, %v938, 0
    %941 = vmatpush.msra.mxu0 0.0
    %942 = vmatpush.msra.mxu0 0.0
    %943 = vmatpush.msra.mxu0 0.0
    %944 = vmatpush.msra.mxu0 0.0
    %945 = vmatpush.msra.mxu0 0.0
    %946 = vmatpush.msra.mxu0 0.0
    %947 = vmatpush.msra.mxu0 0.0
    %948 = vmatpush.msra.mxu0 0.0
    %949 = vmatpush.msra.mxu0 %v176
    %950 = vmatpush.msra.mxu0 %v174
    %951 = vmatpush.msra.mxu0 %v172
    %952 = vmatpush.msra.mxu0 %v170
    %953 = vmatpush.msra.mxu0 %v168
    %954 = vmatpush.msra.mxu0 %v166
    %955 = vmatpush.msra.mxu0 %v164
    %956 = vmatpush.msra.mxu0 %v162
    %957 = vmatmul.f32.gmra.mxu0 %v939
    %v958 = vpop.f32.mrf.mxu0
    %v959 = vadd.f32 0.0, %v958
    %960 = vdwg.mxu0
    %961 = vmatpush.msra.mxu0 0.0
    %962 = vmatpush.msra.mxu0 0.0
    %963 = vmatpush.msra.mxu0 0.0
    %964 = vmatpush.msra.mxu0 0.0
    %965 = vmatpush.msra.mxu0 0.0
    %966 = vmatpush.msra.mxu0 0.0
    %967 = vmatpush.msra.mxu0 0.0
    %968 = vmatpush.msra.mxu0 0.0
    %969 = vmatpush.msra.mxu0 %v177
    %970 = vmatpush.msra.mxu0 %v175
    %971 = vmatpush.msra.mxu0 %v173
    %972 = vmatpush.msra.mxu0 %v171
    %973 = vmatpush.msra.mxu0 %v169
    %974 = vmatpush.msra.mxu0 %v167
    %975 = vmatpush.msra.mxu0 %v165
    %976 = vmatpush.msra.mxu0 %v163
    %977 = vmatmul.f32.gmra.mxu0 %v939
    %v978 = vpop.f32.mrf.mxu0
    %v979 = vadd.f32 0.0, %v978
    %980 = vdwg.mxu0
    %v983 = vrot.slane %v959, 2
    %v984 = vrot.slane %v979, 2
    %v987 = vadd.f32 %v137, %v983
    %v988 = vadd.f32 %v160, %v984
    %v989 = vxor.u32 %v987, 2147483648
    %v990 = vxor.u32 %v988, 2147483648
    %v991 = vmul.f32 %v989, 1.442695
    %v992 = vpow.pop %v991
    %v993 = vmul.f32 %v990, 1.442695
    %v994 = vpow.pop %v993
    %v995 = vadd.f32 %v992, 1.0
    %v996 = vadd.f32 %v994, 1.0
    %v997 = vrcp.pop %v995
    %v998 = vmul.f32 %v995, %v997
    %v999 = vsub.f32 1.0, %v998
    %v1000 = vmul.f32 %v997, %v999
    %v1001 = vadd.f32 %v997, %v1000
    %vm1002 = vweird.f32 %v995
    %vm1003 = vweird.f32 %v997
    %vm1004 = vmor %vm1002, %vm1003
    %v1005 = vsel %vm1004, %v997, %v1001
    %v1006 = vand.u32 2147483647, %v995
    %vm1007 = vcmp.eq.f32.partialorder %v1006, 8.507059e+37
    %v1008 = vand.u32 %v995, 2147483648
    %v1009 = vor.u32 1.1754944e-38, %v1008
    %v1010 = vsel %vm1007, %v1009, %v1005
    %v1011 = vmul.f32 1.0, %v1010
    %v1012 = vrcp.pop %v996
    %v1013 = vmul.f32 %v996, %v1012
    %v1014 = vsub.f32 1.0, %v1013
    %v1015 = vmul.f32 %v1012, %v1014
    %v1016 = vadd.f32 %v1012, %v1015
    %vm1017 = vweird.f32 %v996
    %vm1018 = vweird.f32 %v1012
    %vm1019 = vmor %vm1017, %vm1018
    %v1020 = vsel %vm1019, %v1012, %v1016
    %v1021 = vand.u32 2147483647, %v996
    %vm1022 = vcmp.eq.f32.partialorder %v1021, 8.507059e+37
    %v1023 = vand.u32 %v996, 2147483648
    %v1024 = vor.u32 1.1754944e-38, %v1023
    %v1025 = vsel %vm1022, %v1024, %v1020
    %v1026 = vmul.f32 1.0, %v1025
    %v1027 = vtanh.pop %v988
    %v1029 = vrot.slane %v930, 6
    %v1031 = vmul.f32 %v1011, %v1029
    %1033 = vrot.lane.b32.xlu0 %v1027, 64
    %v1034 = vpop.permute.xlu0 %1033
    %v1036 = vmul.f32 %v1011, %v1034
    %1038 = vrot.lane.b32.xlu0 %v1036, 64
    %v1039 = vpop.permute.xlu0 %1038
    %v1041 = vadd.f32 %v1031, %v1039
    %v1042 = vtanh.pop %v1041
    %1044 = vrot.lane.b32.xlu0 %v1042, 64
    %v1045 = vpop.permute.xlu0 %1044
    %v1047 = vmul.f32 %v1026, %v1045
    %v1049 = vrot.slane %v1047, 6
    %vm1051 = vcmask 261120
    %v1052 = vsel %vm1051, %v278, %v1049
    %v1053 = vrot.slane %v936, 2
    %v1055 = vsel %vm1051, %v388, %v1053
    %v1056 = vrot.slane %v825, 6
    %v1058 = vsel %vm1051, %v499, %v1056
    %v1059 = vrot.slane %v715, 2
    %v1061 = vsel %vm1051, %v610, %v1059
    %v1063 = vsel %vm1051, %v715, %v612
    %v1064 = vrot.slane %v499, 2
    %v1066 = vsel %vm1051, %v825, %v1064
    %v1067 = vrot.slane %v388, 6
    %v1069 = vsel %vm1051, %v936, %v1067
    %v1070 = vrot.slane %v278, 2
    %v1072 = vsel %vm1051, %v1047, %v1070
    %v1074 = vrot.slane %v1055, 2
    %1075 = vrot.lane.b32.xlu0 %v1074, 64
    %v1076 = vpop.permute.xlu0 %1075
    %v1079 = vrot.slane %v1058, 4
    %v1082 = vrot.slane %v1061, 6
    %1083 = vrot.lane.b32.xlu0 %v1082, 64
    %v1084 = vpop.permute.xlu0 %1083
    %v1087 = vrot.slane %v1066, 2
    %1088 = vrot.lane.b32.xlu0 %v1087, 64
    %v1089 = vpop.permute.xlu0 %1088
    %v1092 = vrot.slane %v1069, 4
    %v1095 = vrot.slane %v1072, 6
    %1096 = vrot.lane.b32.xlu0 %v1095, 64
    %v1097 = vpop.permute.xlu0 %1096
    %v1099 = vsel %vm109, %v1052, %v1076
    %v1100 = vsel %vm109, %v1079, %v1084
    %v1101 = vsel %vm109, %v1063, %v1089
    %v1102 = vsel %vm109, %v1092, %v1097
    %v1107 = vrot.slane %v1100, 6
    %v1108 = vrot.slane %v1101, 4
    %v1109 = vrot.slane %v1102, 2
    %vm1110 = vcmask 1041408
    %v1111 = vsel %vm1110, %v1099, %v1107
    %vm1112 = vcmask 1045508
    %v1113 = vsel %vm1112, %v1108, %v1109
    %vm1114 = vcmask 1043456
    %v1115 = vsel %vm1114, %v1111, %v1113
    %1117 = vst [vmem:[#allocation5] sm:$0xff] %v1115
    // Predicated region
    $region30: #{tpu_custom_call.1} parent=1 // pred_check
      _
    $region31: #{tpu_custom_call.1} parent=1 // pred_check_branch
      %1119 = sbr.rel (0) target = $region33
    $region32: #{tpu_custom_call.1} parent=1 // pred_region
      %1121 = vsyncadd [#allocation4], 0
      %s1123 = sshll.u32 [#allocation5], 4
      %s1124 = int_to_ptr.vmem [resolvable:$true] %s1123
      %s1125 = sshll.u32 %s6, 4
      %s1126 = int_to_ptr.hbm [resolvable:$true] %s1125
      %1128 = dma.vmem_to_hbm [thread:$0]  %s1124, 128, %s1126, [#allocation4]
    $region33: #{tpu_custom_call.1} parent=1 // pred_fallthru
      _
    // Predicated region
    $region34: #{tpu_custom_call.1} parent=1 // pred_check
      _
    $region35: #{tpu_custom_call.1} parent=1 // pred_check_branch
      %1130 = sbr.rel (0) target = $region37
    $region36: #{tpu_custom_call.1} parent=1 // pred_region
      %1132 = dma.done [#allocation4], 128
    $region37: #{tpu_custom_call.1} parent=1 // pred_fallthru
      _
    %1133 = vsyncpa [#allocation3], 1
    %1134 = vsyncpa [#allocation4], 1

</llo_original>
